<compile_context>
chip_gen: v5e
topology: v5e:2x2
jax: 0.10.0
libtpu: 0.0.40
codegen_flags: <defaults>
</compile_context>

<pallas_src>
import jax
import jax.numpy as jnp
from jax.experimental import pallas as pl
from jax.experimental.pallas import tpu as pltpu

# Problem dims (lane/sublane friendly padding).
K_IN = 10            # true input features
K_PAD = 16           # padded first-layer contraction (bf16-native sublane count)
H1, H2, H3 = 128, 256, 512
OUT = 2              # true output features
OUT_PAD = 128        # lane-dense padded output width


def _round_up(n, m):
    return ((n + m - 1) // m) * m


def _choose_tb(batch):
    """Adaptive batch tile.

    - tiny batches  : exact multiple-of-8 tile -> no dead rows / dead writeback
    - mid batches   : split into >= 2 tiles so v7x's 2 TensorCores both get work
    - large batches : 1024-row tiles (amortize ~0.35us/step, long MXU runs)
    """
    rb = _round_up(batch, 8)
    if rb <= 256:
        return rb
    half = _round_up((rb + 1) // 2, 128)
    return min(1024, half)


def generator_kernel(x_ref,
                     w1_ref, b1_ref,
                     w2_ref, b2_ref,
                     w3_ref, b3_ref,
                     w4_ref, b4_ref,
                     o_ref):
    # Whole MLP fused: intermediate activations never leave VMEM / vregs.
    # All matmuls run on the MXU in bf16 with f32 accumulation; biases stay f32.
    h = jnp.dot(x_ref[...], w1_ref[...], preferred_element_type=jnp.float32) + b1_ref[...]
    h = jnp.maximum(h, 0.0).astype(jnp.bfloat16)          # ReLU(True)

    h = jnp.dot(h, w2_ref[...], preferred_element_type=jnp.float32) + b2_ref[...]
    h = jnp.maximum(h, 0.0).astype(jnp.bfloat16)

    h = jnp.dot(h, w3_ref[...], preferred_element_type=jnp.float32) + b3_ref[...]
    h = jnp.maximum(h, 0.0).astype(jnp.bfloat16)

    out = jnp.dot(h, w4_ref[...], preferred_element_type=jnp.float32) + b4_ref[...]
    o_ref[...] = out.astype(o_ref.dtype)                  # bf16 lane-dense (tb, 128) store


def generator_forward(x, params, tb=None):
    """x: (B, 10) float32. params: dict with w1..w4 (in,out) and b1..b4 (1,out), f32."""
    B = x.shape[0]
    if tb is None:
        tb = _choose_tb(B)
    n_tiles = pl.cdiv(B, tb)
    rows = n_tiles * tb          # output rows covered by the grid (>= B)

    bf16 = jnp.bfloat16
    # Cheap feature pad 10->16 and one-time bf16 cast of x / weights.
    # NOTE: no batch-pad copy -- a ragged last block reads past B (garbage rows
    # are mathematically isolated per-row and sliced off below).
    x_p  = jnp.pad(x, ((0, 0), (0, K_PAD - K_IN))).astype(bf16)
    w1_p = jnp.pad(params["w1"], ((0, K_PAD - K_IN), (0, 0))).astype(bf16)
    w2   = params["w2"].astype(bf16)
    w3   = params["w3"].astype(bf16)
    w4_p = jnp.pad(params["w4"], ((0, 0), (0, OUT_PAD - OUT))).astype(bf16)
    b4_p = jnp.pad(params["b4"], ((0, 0), (0, OUT_PAD - OUT)))

    # Weights/biases: constant index_map -> same block every step, stays VMEM-resident
    # (no re-DMA across grid steps). x / out: tiled over batch.
    const = lambda i: (0, 0)
    batch = lambda i: (i, 0)

    in_specs = [
        pl.BlockSpec((tb, K_PAD), batch),      # x (bf16)
        pl.BlockSpec((K_PAD, H1), const),      # w1 (bf16)
        pl.BlockSpec((1, H1), const),          # b1 (f32)
        pl.BlockSpec((H1, H2), const),         # w2 (bf16)
        pl.BlockSpec((1, H2), const),          # b2 (f32)
        pl.BlockSpec((H2, H3), const),         # w3 (bf16)
        pl.BlockSpec((1, H3), const),          # b3 (f32)
        pl.BlockSpec((H3, OUT_PAD), const),    # w4 (bf16, padded)
        pl.BlockSpec((1, OUT_PAD), const),     # b4 (f32, padded)
    ]
    out_spec = pl.BlockSpec((tb, OUT_PAD), batch)

    flops = 2 * rows * (K_PAD * H1 + H1 * H2 + H2 * H3 + H3 * OUT_PAD)
    weight_bytes = (2 * (K_PAD * H1 + H1 * H2 + H2 * H3 + H3 * OUT_PAD)
                    + 4 * (H1 + H2 + H3 + OUT_PAD))
    bytes_accessed = 2 * rows * K_PAD + weight_bytes + 2 * rows * OUT_PAD

    out_padded = pl.pallas_call(
        generator_kernel,
        out_shape=jax.ShapeDtypeStruct((rows, OUT_PAD), bf16),
        grid_spec=pltpu.PrefetchScalarGridSpec(
            num_scalar_prefetch=0,
            grid=(n_tiles,),
            in_specs=in_specs,
            out_specs=out_spec,
        ),
        compiler_params=pltpu.CompilerParams(
            dimension_semantics=("parallel",),      # shard batch tiles across TCs (v7x)
            vmem_limit_bytes=32 * 1024 * 1024,      # usage << 32 MiB even at tb=1024
        ),
        cost_estimate=pl.CostEstimate(
            flops=flops, transcendentals=0, bytes_accessed=bytes_accessed),
    )(x_p, w1_p, params["b1"], w2, params["b2"], w3, params["b3"], w4_p, b4_p)

    # Slice off padded rows/lanes; return f32 to match the torch module's output dtype.
    return out_padded[:B, :OUT].astype(jnp.float32)


def init_params(key):
    """Deterministic init mimicking PyTorch nn.Linear default (uniform +/- 1/sqrt(fan_in))."""
    dims = [(K_IN, H1), (H1, H2), (H2, H3), (H3, OUT)]
    params = {}
    for i, (fan_in, fan_out) in enumerate(dims, start=1):
        key, kw, kb = jax.random.split(key, 3)
        bound = 1.0 / jnp.sqrt(jnp.float32(fan_in))
        # stored as (in, out) -- i.e. torch weight (out, in) transposed.
        params[f"w{i}"] = jax.random.uniform(
            kw, (fan_in, fan_out), jnp.float32, minval=-bound, maxval=bound)
        params[f"b{i}"] = jax.random.uniform(
            kb, (1, fan_out), jnp.float32, minval=-bound, maxval=bound)
    return params


def reference_forward(x, params):
    h = jnp.maximum(x @ params["w1"] + params["b1"], 0.0)
    h = jnp.maximum(h @ params["w2"] + params["b2"], 0.0)
    h = jnp.maximum(h @ params["w3"] + params["b3"], 0.0)
    return h @ params["w4"] + params["b4"]


if __name__ == "__main__":
    key = jax.random.PRNGKey(0)
    kx, kp, kx2 = jax.random.split(key, 3)
    params = init_params(kp)

    # bf16 MXU path -> compare against the f32 reference with a relaxed tolerance.
    TOL = 5e-2

    # 1) Small inference micro-batch: exact-fit 8-row tile, single grid step.
    B = 8
    x = jax.random.normal(kx, (B, K_IN), dtype=jnp.float32)
    out = jax.block_until_ready(generator_forward(x, params))
    ref = reference_forward(x, params)
    assert out.shape == (B, OUT), out.shape
    err = jnp.max(jnp.abs(out - ref))
    assert err < TOL, f"small-batch max abs err = {err}"

    # 2) Larger ragged batch: multi-tile 'parallel' grid with a partial last block.
    B2 = 300
    x2 = jax.random.normal(kx2, (B2, K_IN), dtype=jnp.float32)
    out2 = jax.block_until_ready(generator_forward(x2, params))
    ref2 = reference_forward(x2, params)
    assert out2.shape == (B2, OUT), out2.shape
    err2 = jnp.max(jnp.abs(out2 - ref2))
    assert err2 < TOL, f"large-batch max abs err = {err2}"

    print("KERNEL_OK")
</pallas_src>

<mosaic_0001>
module attributes {stable_mosaic.version = 11 : i64} {
  func.func @generator_kernel(%arg0: i32, %arg1: memref<8x16xbf16, #tpu.memory_space<vmem>>, %arg2: memref<16x128xbf16, #tpu.memory_space<vmem>>, %arg3: memref<1x128xf32, #tpu.memory_space<vmem>>, %arg4: memref<128x256xbf16, #tpu.memory_space<vmem>>, %arg5: memref<1x256xf32, #tpu.memory_space<vmem>>, %arg6: memref<256x512xbf16, #tpu.memory_space<vmem>>, %arg7: memref<1x512xf32, #tpu.memory_space<vmem>>, %arg8: memref<512x128xbf16, #tpu.memory_space<vmem>>, %arg9: memref<1x128xf32, #tpu.memory_space<vmem>>, %arg10: memref<8x128xbf16, #tpu.memory_space<vmem>>) attributes {dimension_semantics = [#tpu.dimension_semantics<parallel>], iteration_bounds = array<i64: 1>, scalar_prefetch = 0 : i64, scratch_operands = 0 : i64, tpu.core_type = #tpu.core_type<tc>, window_params = [{transform_indices = @transform_0, window_bounds = array<i64: 8, 16>}, {pipeline_mode = #tpu.pipeline_mode<synchronous>, transform_indices = @transform_1, window_bounds = array<i64: 16, 128>}, {pipeline_mode = #tpu.pipeline_mode<synchronous>, transform_indices = @transform_2, window_bounds = array<i64: 1, 128>}, {pipeline_mode = #tpu.pipeline_mode<synchronous>, transform_indices = @transform_3, window_bounds = array<i64: 128, 256>}, {pipeline_mode = #tpu.pipeline_mode<synchronous>, transform_indices = @transform_4, window_bounds = array<i64: 1, 256>}, {pipeline_mode = #tpu.pipeline_mode<synchronous>, transform_indices = @transform_5, window_bounds = array<i64: 256, 512>}, {pipeline_mode = #tpu.pipeline_mode<synchronous>, transform_indices = @transform_6, window_bounds = array<i64: 1, 512>}, {pipeline_mode = #tpu.pipeline_mode<synchronous>, transform_indices = @transform_7, window_bounds = array<i64: 512, 128>}, {pipeline_mode = #tpu.pipeline_mode<synchronous>, transform_indices = @transform_8, window_bounds = array<i64: 1, 128>}, {transform_indices = @transform_9, window_bounds = array<i64: 8, 128>}]} {
    %c0 = arith.constant 0 : index
    %c0_0 = arith.constant 0 : index
    %0 = vector.load %arg1[%c0, %c0_0] : memref<8x16xbf16, #tpu.memory_space<vmem>>, vector<8x16xbf16>
    %c0_1 = arith.constant 0 : index
    %c0_2 = arith.constant 0 : index
    %1 = vector.load %arg2[%c0_1, %c0_2] : memref<16x128xbf16, #tpu.memory_space<vmem>>, vector<16x128xbf16>
    %cst = arith.constant dense<0.000000e+00> : vector<8x128xf32>
    %2 = tpu.matmul %0, %1, %cst {dimension_numbers = #tpu.dot_dimension_numbers<[1], [0], [0], [1], [0, 0, 1, 1], [], []>} : vector<8x16xbf16>, vector<16x128xbf16>, vector<8x128xf32> -> vector<8x128xf32>
    %c0_3 = arith.constant 0 : index
    %c0_4 = arith.constant 0 : index
    %3 = vector.load %arg3[%c0_3, %c0_4] : memref<1x128xf32, #tpu.memory_space<vmem>>, vector<1x128xf32>
    %4 = vector.broadcast %3 : vector<1x128xf32> to vector<8x128xf32>
    %5 = arith.addf %2, %4 : vector<8x128xf32>
    %cst_5 = arith.constant 0.000000e+00 : f32
    %6 = vector.broadcast %cst_5 : f32 to vector<8x128xf32>
    %7 = arith.maximumf %5, %6 : vector<8x128xf32>
    %8 = arith.truncf %7 : vector<8x128xf32> to vector<8x128xbf16>
    %c0_6 = arith.constant 0 : index
    %c0_7 = arith.constant 0 : index
    %9 = vector.load %arg4[%c0_6, %c0_7] : memref<128x256xbf16, #tpu.memory_space<vmem>>, vector<128x256xbf16>
    %cst_8 = arith.constant dense<0.000000e+00> : vector<8x256xf32>
    %10 = tpu.matmul %8, %9, %cst_8 {dimension_numbers = #tpu.dot_dimension_numbers<[1], [0], [0], [1], [0, 0, 1, 1], [], []>} : vector<8x128xbf16>, vector<128x256xbf16>, vector<8x256xf32> -> vector<8x256xf32>
    %c0_9 = arith.constant 0 : index
    %c0_10 = arith.constant 0 : index
    %11 = vector.load %arg5[%c0_9, %c0_10] : memref<1x256xf32, #tpu.memory_space<vmem>>, vector<1x256xf32>
    %12 = vector.broadcast %11 : vector<1x256xf32> to vector<8x256xf32>
    %13 = arith.addf %10, %12 : vector<8x256xf32>
    %cst_11 = arith.constant 0.000000e+00 : f32
    %14 = vector.broadcast %cst_11 : f32 to vector<8x256xf32>
    %15 = arith.maximumf %13, %14 : vector<8x256xf32>
    %16 = arith.truncf %15 : vector<8x256xf32> to vector<8x256xbf16>
    %c0_12 = arith.constant 0 : index
    %c0_13 = arith.constant 0 : index
    %17 = vector.load %arg6[%c0_12, %c0_13] : memref<256x512xbf16, #tpu.memory_space<vmem>>, vector<256x512xbf16>
    %cst_14 = arith.constant dense<0.000000e+00> : vector<8x512xf32>
    %18 = tpu.matmul %16, %17, %cst_14 {dimension_numbers = #tpu.dot_dimension_numbers<[1], [0], [0], [1], [0, 0, 1, 1], [], []>} : vector<8x256xbf16>, vector<256x512xbf16>, vector<8x512xf32> -> vector<8x512xf32>
    %c0_15 = arith.constant 0 : index
    %c0_16 = arith.constant 0 : index
    %19 = vector.load %arg7[%c0_15, %c0_16] : memref<1x512xf32, #tpu.memory_space<vmem>>, vector<1x512xf32>
    %20 = vector.broadcast %19 : vector<1x512xf32> to vector<8x512xf32>
    %21 = arith.addf %18, %20 : vector<8x512xf32>
    %cst_17 = arith.constant 0.000000e+00 : f32
    %22 = vector.broadcast %cst_17 : f32 to vector<8x512xf32>
    %23 = arith.maximumf %21, %22 : vector<8x512xf32>
    %24 = arith.truncf %23 : vector<8x512xf32> to vector<8x512xbf16>
    %c0_18 = arith.constant 0 : index
    %c0_19 = arith.constant 0 : index
    %25 = vector.load %arg8[%c0_18, %c0_19] : memref<512x128xbf16, #tpu.memory_space<vmem>>, vector<512x128xbf16>
    %cst_20 = arith.constant dense<0.000000e+00> : vector<8x128xf32>
    %26 = tpu.matmul %24, %25, %cst_20 {dimension_numbers = #tpu.dot_dimension_numbers<[1], [0], [0], [1], [0, 0, 1, 1], [], []>} : vector<8x512xbf16>, vector<512x128xbf16>, vector<8x128xf32> -> vector<8x128xf32>
    %c0_21 = arith.constant 0 : index
    %c0_22 = arith.constant 0 : index
    %27 = vector.load %arg9[%c0_21, %c0_22] : memref<1x128xf32, #tpu.memory_space<vmem>>, vector<1x128xf32>
    %28 = vector.broadcast %27 : vector<1x128xf32> to vector<8x128xf32>
    %29 = arith.addf %26, %28 : vector<8x128xf32>
    %30 = arith.truncf %29 : vector<8x128xf32> to vector<8x128xbf16>
    %c0_23 = arith.constant 0 : index
    %c0_24 = arith.constant 0 : index
    %31 = vector.load %arg10[%c0_23, %c0_24] : memref<8x128xbf16, #tpu.memory_space<vmem>>, vector<8x128xbf16>
    tpu.vector_store %arg10[%c0_23, %c0_24], %30 {strides = array<i32>} : memref<8x128xbf16, #tpu.memory_space<vmem>>, vector<8x128xbf16>,
    return
  }
  func.func @transform_0(%arg0: i32) -> (i32, i32) {
    %c0_i32 = arith.constant 0 : i32
    %c0_i32_0 = arith.constant 0 : i32
    return %arg0, %c0_i32 : i32, i32
  }
  func.func @transform_1(%arg0: i32) -> (i32, i32) {
    %c0_i32 = arith.constant 0 : i32
    %c0_i32_0 = arith.constant 0 : i32
    %c0_i32_1 = arith.constant 0 : i32
    return %c0_i32, %c0_i32_0 : i32, i32
  }
  func.func @transform_2(%arg0: i32) -> (i32, i32) {
    %c0_i32 = arith.constant 0 : i32
    %c0_i32_0 = arith.constant 0 : i32
    %c0_i32_1 = arith.constant 0 : i32
    return %c0_i32, %c0_i32_0 : i32, i32
  }
  func.func @transform_3(%arg0: i32) -> (i32, i32) {
    %c0_i32 = arith.constant 0 : i32
    %c0_i32_0 = arith.constant 0 : i32
    %c0_i32_1 = arith.constant 0 : i32
    return %c0_i32, %c0_i32_0 : i32, i32
  }
  func.func @transform_4(%arg0: i32) -> (i32, i32) {
    %c0_i32 = arith.constant 0 : i32
    %c0_i32_0 = arith.constant 0 : i32
    %c0_i32_1 = arith.constant 0 : i32
    return %c0_i32, %c0_i32_0 : i32, i32
  }
  func.func @transform_5(%arg0: i32) -> (i32, i32) {
    %c0_i32 = arith.constant 0 : i32
    %c0_i32_0 = arith.constant 0 : i32
    %c0_i32_1 = arith.constant 0 : i32
    return %c0_i32, %c0_i32_0 : i32, i32
  }
  func.func @transform_6(%arg0: i32) -> (i32, i32) {
    %c0_i32 = arith.constant 0 : i32
    %c0_i32_0 = arith.constant 0 : i32
    %c0_i32_1 = arith.constant 0 : i32
    return %c0_i32, %c0_i32_0 : i32, i32
  }
  func.func @transform_7(%arg0: i32) -> (i32, i32) {
    %c0_i32 = arith.constant 0 : i32
    %c0_i32_0 = arith.constant 0 : i32
    %c0_i32_1 = arith.constant 0 : i32
    return %c0_i32, %c0_i32_0 : i32, i32
  }
  func.func @transform_8(%arg0: i32) -> (i32, i32) {
    %c0_i32 = arith.constant 0 : i32
    %c0_i32_0 = arith.constant 0 : i32
    %c0_i32_1 = arith.constant 0 : i32
    return %c0_i32, %c0_i32_0 : i32, i32
  }
  func.func @transform_9(%arg0: i32) -> (i32, i32) {
    %c0_i32 = arith.constant 0 : i32
    %c0_i32_0 = arith.constant 0 : i32
    return %arg0, %c0_i32 : i32, i32
  }
}

</mosaic_0001>

<llo_original>
// kernel: tpu_custom_call.1
$region0: #{tpu_custom_call.1}
  #allocation0 [shape = 'u32[]', space=smem, size = 0x4, offset = 0x4, fixed_abs, tag = 'smem constant byte address 0x4 - core index']
  #allocation1 [shape = 'u32[72,128]{1,0:T(1,128)}', space=vmem, size = 0x9000, scoped, tag = 'internal scratch']
  %s0 = inlined_call_operand.hbm [shape: bf16[8,16], index: 0, kind: input, shape index: {}]
  %s1 = inlined_call_operand.hbm [shape: bf16[16,128], index: 1, kind: input, shape index: {}]
  %s2 = inlined_call_operand.vmem [shape: f32[1,128], index: 2, kind: input, shape index: {}]
  %s3 = inlined_call_operand.hbm [shape: bf16[128,256], index: 3, kind: input, shape index: {}]
  %s4 = inlined_call_operand.hbm [shape: f32[1,256], index: 4, kind: input, shape index: {}]
  %s5 = inlined_call_operand.hbm [shape: bf16[256,512], index: 5, kind: input, shape index: {}]
  %s6 = inlined_call_operand.vmem [shape: f32[1,512], index: 6, kind: input, shape index: {}]
  %s7 = inlined_call_operand.hbm [shape: bf16[512,128], index: 7, kind: input, shape index: {}]
  %s8 = inlined_call_operand.vmem [shape: f32[1,128], index: 8, kind: input, shape index: {}]
  %s9 = inlined_call_operand.hbm [shape: bf16[8,128], index: 9, kind: output, shape index: {}]
  %s10 = sld [smem:[#allocation0]]
  $region70: #{tpu_custom_call.1} parent=0
    _
  %s12 = ssub.s32 1, %s10
  %s13 = scalar_select 0, %s12, %s10
  $region1: #{tpu_custom_call.1} parent=0
    #allocation2 [shape = 'u8[2048]{0}', space=vmem, size = 0x800, scoped, tag = 'input window, operand 0, single buffered']
    #allocation3 [shape = 's32[1]{0}', space=sflag, size = 0x4, scoped, tag = 'scoped memory for tpu_custom_call.1']
    #allocation4 [shape = 's32[1]{0}', space=sflag, size = 0x4, scoped, tag = 'scoped memory for tpu_custom_call.1']
    #allocation5 [shape = 'u8[4096]{0}', space=vmem, size = 0x1000, scoped, tag = 'input window, operand 1, single buffered']
    #allocation6 [shape = 's32[1]{0}', space=sflag, size = 0x4, scoped, tag = 'scoped memory for tpu_custom_call.1']
    #allocation7 [shape = 'u8[65536]{0}', space=vmem, size = 0x10000, scoped, tag = 'input window, operand 3, single buffered']
    #allocation8 [shape = 'u8[1024]{0}', space=vmem, size = 0x400, scoped, tag = 'input window, operand 4, single buffered']
    #allocation9 [shape = 's32[1]{0}', space=sflag, size = 0x4, scoped, tag = 'scoped memory for tpu_custom_call.1']
    #allocation10 [shape = 'u8[262144]{0}', space=vmem, size = 0x40000, scoped, tag = 'input window, operand 5, single buffered']
    #allocation11 [shape = 'u8[131072]{0}', space=vmem, size = 0x20000, scoped, tag = 'input window, operand 7, single buffered']
    #allocation12 [shape = 's32[1]{0}', space=sflag, size = 0x4, scoped, tag = 'scoped memory for tpu_custom_call.1']
    #allocation13 [shape = 'u8[2048]{0}', space=vmem, size = 0x800, scoped, tag = 'output window, operand 0, single buffered']
    %14 = vsyncpa [#allocation3], 0
    %15 = vsyncpa [#allocation6], 0
    %16 = vsyncpa [#allocation9], 0
    %17 = vsyncpa [#allocation12], 0
    %18 = vsyncpa [#allocation4], 0
    // Predicated region
    $region2: #{tpu_custom_call.1} parent=1 // pred_check
      _
    $region3: #{tpu_custom_call.1} parent=1 // pred_check_branch
      %20 = sbr.rel (0) target = $region5
    $region4: #{tpu_custom_call.1} parent=1 // pred_region
      %22 = vsyncadd [#allocation3], 0
      %s24 = sshll.u32 %s0, 4
      %s25 = int_to_ptr.hbm [resolvable:$true] %s24
      %s26 = sshll.u32 [#allocation2], 4
      %s27 = int_to_ptr.vmem [resolvable:$true] %s26
      %29 = dma.hbm_to_vmem [thread:$0]  %s25, 64, %s27, [#allocation3]
    $region5: #{tpu_custom_call.1} parent=1 // pred_fallthru
      _
    // Predicated region
    $region6: #{tpu_custom_call.1} parent=1 // pred_check
      _
    $region7: #{tpu_custom_call.1} parent=1 // pred_check_branch
      %31 = sbr.rel (0) target = $region9
    $region8: #{tpu_custom_call.1} parent=1 // pred_region
      %33 = vsyncadd [#allocation6], 0
      %s34 = sshll.u32 %s1, 4
      %s35 = int_to_ptr.hbm [resolvable:$true] %s34
      %s36 = sshll.u32 [#allocation5], 4
      %s37 = int_to_ptr.vmem [resolvable:$true] %s36
      %42 = dma.hbm_to_vmem [thread:$0]  %s35, 128, %s37, [#allocation6], 64, 64, 4
    $region9: #{tpu_custom_call.1} parent=1 // pred_fallthru
      _
    // Predicated region
    $region10: #{tpu_custom_call.1} parent=1 // pred_check
      _
    $region11: #{tpu_custom_call.1} parent=1 // pred_check_branch
      %44 = sbr.rel (0) target = $region13
    $region12: #{tpu_custom_call.1} parent=1 // pred_region
      _
    $region13: #{tpu_custom_call.1} parent=1 // pred_fallthru
      _
    // Predicated region
    $region14: #{tpu_custom_call.1} parent=1 // pred_check
      _
    $region15: #{tpu_custom_call.1} parent=1 // pred_check_branch
      %46 = sbr.rel (0) target = $region17
    $region16: #{tpu_custom_call.1} parent=1 // pred_region
      %48 = vsyncadd [#allocation6], 0
      %s49 = sshll.u32 %s3, 4
      %s50 = int_to_ptr.hbm [resolvable:$true] %s49
      %s51 = sshll.u32 [#allocation7], 4
      %s52 = int_to_ptr.vmem [resolvable:$true] %s51
      %57 = dma.hbm_to_vmem [thread:$0]  %s50, 2048, %s52, [#allocation6], 128, 128, 8
    $region17: #{tpu_custom_call.1} parent=1 // pred_fallthru
      _
    // Predicated region
    $region18: #{tpu_custom_call.1} parent=1 // pred_check
      _
    $region19: #{tpu_custom_call.1} parent=1 // pred_check_branch
      %59 = sbr.rel (0) target = $region21
    $region20: #{tpu_custom_call.1} parent=1 // pred_region
      %61 = vsyncadd [#allocation9], 0
      %s63 = sshll.u32 %s4, 4
      %s64 = int_to_ptr.hbm [resolvable:$true] %s63
      %s65 = sshll.u32 [#allocation8], 4
      %s66 = int_to_ptr.vmem [resolvable:$true] %s65
      %68 = dma.hbm_to_vmem [thread:$0]  %s64, 32, %s66, [#allocation9]
    $region21: #{tpu_custom_call.1} parent=1 // pred_fallthru
      _
    // Predicated region
    $region22: #{tpu_custom_call.1} parent=1 // pred_check
      _
    $region23: #{tpu_custom_call.1} parent=1 // pred_check_branch
      %70 = sbr.rel (0) target = $region25
    $region24: #{tpu_custom_call.1} parent=1 // pred_region
      %72 = vsyncadd [#allocation9], 0
      %s73 = sshll.u32 %s5, 4
      %s74 = int_to_ptr.hbm [resolvable:$true] %s73
      %s75 = sshll.u32 [#allocation10], 4
      %s76 = int_to_ptr.vmem [resolvable:$true] %s75
      %81 = dma.hbm_to_vmem [thread:$0]  %s74, 8192, %s76, [#allocation9], 256, 256, 16
    $region25: #{tpu_custom_call.1} parent=1 // pred_fallthru
      _
    // Predicated region
    $region26: #{tpu_custom_call.1} parent=1 // pred_check
      _
    $region27: #{tpu_custom_call.1} parent=1 // pred_check_branch
      %83 = sbr.rel (0) target = $region29
    $region28: #{tpu_custom_call.1} parent=1 // pred_region
      _
    $region29: #{tpu_custom_call.1} parent=1 // pred_fallthru
      _
    // Predicated region
    $region30: #{tpu_custom_call.1} parent=1 // pred_check
      _
    $region31: #{tpu_custom_call.1} parent=1 // pred_check_branch
      %85 = sbr.rel (0) target = $region33
    $region32: #{tpu_custom_call.1} parent=1 // pred_region
      %87 = vsyncadd [#allocation12], 0
      %s88 = sshll.u32 %s7, 4
      %s89 = int_to_ptr.hbm [resolvable:$true] %s88
      %s90 = sshll.u32 [#allocation11], 4
      %s91 = int_to_ptr.vmem [resolvable:$true] %s90
      %96 = dma.hbm_to_vmem [thread:$0]  %s89, 4096, %s91, [#allocation12], 64, 64, 4
    $region33: #{tpu_custom_call.1} parent=1 // pred_fallthru
      _
    // Predicated region
    $region34: #{tpu_custom_call.1} parent=1 // pred_check
      _
    $region35: #{tpu_custom_call.1} parent=1 // pred_check_branch
      %98 = sbr.rel (0) target = $region37
    $region36: #{tpu_custom_call.1} parent=1 // pred_region
      _
    $region37: #{tpu_custom_call.1} parent=1 // pred_fallthru
      _
    // Predicated region
    $region38: #{tpu_custom_call.1} parent=1 // pred_check
      _
    $region39: #{tpu_custom_call.1} parent=1 // pred_check_branch
      %100 = sbr.rel (0) target = $region41
    $region40: #{tpu_custom_call.1} parent=1 // pred_region
      %102 = dma.done [#allocation3], 64
    $region41: #{tpu_custom_call.1} parent=1 // pred_fallthru
      _
    // Predicated region
    $region42: #{tpu_custom_call.1} parent=1 // pred_check
      _
    $region43: #{tpu_custom_call.1} parent=1 // pred_check_branch
      %104 = sbr.rel (0) target = $region45
    $region44: #{tpu_custom_call.1} parent=1 // pred_region
      %106 = dma.done [#allocation6], 128
    $region45: #{tpu_custom_call.1} parent=1 // pred_fallthru
      _
    // Predicated region
    $region46: #{tpu_custom_call.1} parent=1 // pred_check
      _
    $region47: #{tpu_custom_call.1} parent=1 // pred_check_branch
      %108 = sbr.rel (0) target = $region49
    $region48: #{tpu_custom_call.1} parent=1 // pred_region
      %110 = dma.done [#allocation6], 2048
    $region49: #{tpu_custom_call.1} parent=1 // pred_fallthru
      _
    // Predicated region
    $region50: #{tpu_custom_call.1} parent=1 // pred_check
      _
    $region51: #{tpu_custom_call.1} parent=1 // pred_check_branch
      %112 = sbr.rel (0) target = $region53
    $region52: #{tpu_custom_call.1} parent=1 // pred_region
      %114 = dma.done [#allocation9], 32
    $region53: #{tpu_custom_call.1} parent=1 // pred_fallthru
      _
    // Predicated region
    $region54: #{tpu_custom_call.1} parent=1 // pred_check
      _
    $region55: #{tpu_custom_call.1} parent=1 // pred_check_branch
      %116 = sbr.rel (0) target = $region57
    $region56: #{tpu_custom_call.1} parent=1 // pred_region
      %118 = dma.done [#allocation9], 8192
    $region57: #{tpu_custom_call.1} parent=1 // pred_fallthru
      _
    // Predicated region
    $region58: #{tpu_custom_call.1} parent=1 // pred_check
      _
    $region59: #{tpu_custom_call.1} parent=1 // pred_check_branch
      %120 = sbr.rel (0) target = $region61
    $region60: #{tpu_custom_call.1} parent=1 // pred_region
      %122 = dma.done [#allocation12], 4096
    $region61: #{tpu_custom_call.1} parent=1 // pred_fallthru
      _
    %v124 = vld [vmem:[#allocation2] sm:$0xf]
    %v125 = vld [vmem:[#allocation5] sm:$0xf]
    %v126 = vld [vmem:[#allocation5 + $0x4] sm:$0xf]
    %v127 = vld [vmem:[%s2] sm:$0x1]
    %v129 = vperm.slane %v127, 0
    %v133 = vunpack.c.l.b16 %v125
    %v134 = vunpack.c.l.b16 %v126
    %v135 = vpack.c.b16 %v134, %v133
    %vm137 = vcmask 130048
    %v139 = vsel %vm137, %v124, 0
    %141 = vmatpush.bf16.msra.mxu0 0
    %142 = vmatpush.bf16.msra.mxu0 0
    %143 = vmatpush.bf16.msra.mxu0 0
    %144 = vmatpush.bf16.msra.mxu0 0
    %145 = vmatpush.bf16.msra.mxu0 0
    %146 = vmatpush.bf16.msra.mxu0 0
    %147 = vmatpush.bf16.msra.mxu0 0
    %148 = vmatpush.bf16.msra.mxu0 %v135
    %149 = vmatmul.bf16.gmra.mxu0 %v139
    %v150 = vpop.f32.mrf.mxu0
    %v151 = vadd.f32 %v129, %v150
    %v152 = vpop.f32.mrf.mxu0
    %153 = vdwg.mxu0
    %v154 = vmax.f32 %v151, 0.0
    %v155 = vpack.c.bf16 %v154, %v154
    %v156 = vld [vmem:[#allocation7] sm:$0xff]
    %v157 = vld [vmem:[#allocation7 + $0x8] sm:$0xff]
    %v158 = vld [vmem:[#allocation7 + $0x10] sm:$0xff]
    %v159 = vld [vmem:[#allocation7 + $0x18] sm:$0xff]
    %v160 = vld [vmem:[#allocation7 + $0x20] sm:$0xff]
    %v161 = vld [vmem:[#allocation7 + $0x28] sm:$0xff]
    %v162 = vld [vmem:[#allocation7 + $0x30] sm:$0xff]
    %v163 = vld [vmem:[#allocation7 + $0x38] sm:$0xff]
    %v164 = vld [vmem:[#allocation7 + $0x40] sm:$0xff]
    %v165 = vld [vmem:[#allocation7 + $0x48] sm:$0xff]
    %v166 = vld [vmem:[#allocation7 + $0x50] sm:$0xff]
    %v167 = vld [vmem:[#allocation7 + $0x58] sm:$0xff]
    %v168 = vld [vmem:[#allocation7 + $0x60] sm:$0xff]
    %v169 = vld [vmem:[#allocation7 + $0x68] sm:$0xff]
    %v170 = vld [vmem:[#allocation7 + $0x70] sm:$0xff]
    %v171 = vld [vmem:[#allocation7 + $0x78] sm:$0xff]
    %v172 = vld [vmem:[#allocation8] sm:$0x3]
    %v174 = vperm.slane %v172, 0
    %v175 = vperm.slane %v172, 1
    %v194 = vunpack.c.l.b16 %v156
    %v195 = vunpack.c.h.b16 %v156
    %v196 = vunpack.c.l.b16 %v157
    %v197 = vunpack.c.h.b16 %v157
    %v198 = vunpack.c.l.b16 %v158
    %v199 = vunpack.c.h.b16 %v158
    %v200 = vunpack.c.l.b16 %v159
    %v201 = vunpack.c.h.b16 %v159
    %v202 = vunpack.c.l.b16 %v160
    %v203 = vunpack.c.h.b16 %v160
    %v204 = vunpack.c.l.b16 %v161
    %v205 = vunpack.c.h.b16 %v161
    %v206 = vunpack.c.l.b16 %v162
    %v207 = vunpack.c.h.b16 %v162
    %v208 = vunpack.c.l.b16 %v163
    %v209 = vunpack.c.h.b16 %v163
    %v210 = vunpack.c.l.b16 %v164
    %v211 = vunpack.c.h.b16 %v164
    %v212 = vunpack.c.l.b16 %v165
    %v213 = vunpack.c.h.b16 %v165
    %v214 = vunpack.c.l.b16 %v166
    %v215 = vunpack.c.h.b16 %v166
    %v216 = vunpack.c.l.b16 %v167
    %v217 = vunpack.c.h.b16 %v167
    %v218 = vunpack.c.l.b16 %v168
    %v219 = vunpack.c.h.b16 %v168
    %v220 = vunpack.c.l.b16 %v169
    %v221 = vunpack.c.h.b16 %v169
    %v222 = vunpack.c.l.b16 %v170
    %v223 = vunpack.c.h.b16 %v170
    %v224 = vunpack.c.l.b16 %v171
    %v225 = vunpack.c.h.b16 %v171
    %v226 = vpack.c.b16 %v196, %v194
    %v227 = vpack.c.b16 %v197, %v195
    %v228 = vpack.c.b16 %v200, %v198
    %v229 = vpack.c.b16 %v201, %v199
    %v230 = vpack.c.b16 %v204, %v202
    %v231 = vpack.c.b16 %v205, %v203
    %v232 = vpack.c.b16 %v208, %v206
    %v233 = vpack.c.b16 %v209, %v207
    %v234 = vpack.c.b16 %v212, %v210
    %v235 = vpack.c.b16 %v213, %v211
    %v236 = vpack.c.b16 %v216, %v214
    %v237 = vpack.c.b16 %v217, %v215
    %v238 = vpack.c.b16 %v220, %v218
    %v239 = vpack.c.b16 %v221, %v219
    %v240 = vpack.c.b16 %v224, %v222
    %v241 = vpack.c.b16 %v225, %v223
    %258 = vmatpush.bf16.msra.mxu0 %v240
    %259 = vmatpush.bf16.msra.mxu0 %v238
    %260 = vmatpush.bf16.msra.mxu0 %v236
    %261 = vmatpush.bf16.msra.mxu0 %v234
    %262 = vmatpush.bf16.msra.mxu0 %v232
    %263 = vmatpush.bf16.msra.mxu0 %v230
    %264 = vmatpush.bf16.msra.mxu0 %v228
    %265 = vmatpush.bf16.msra.mxu0 %v226
    %266 = vmatmul.bf16.gmra.mxu0 %v155
    %v267 = vpop.f32.mrf.mxu0
    %v268 = vadd.f32 %v174, %v267
    %v269 = vpop.f32.mrf.mxu0
    %270 = vdwg.mxu0
    %271 = vmatpush.bf16.msra.mxu0 %v241
    %272 = vmatpush.bf16.msra.mxu0 %v239
    %273 = vmatpush.bf16.msra.mxu0 %v237
    %274 = vmatpush.bf16.msra.mxu0 %v235
    %275 = vmatpush.bf16.msra.mxu0 %v233
    %276 = vmatpush.bf16.msra.mxu0 %v231
    %277 = vmatpush.bf16.msra.mxu0 %v229
    %278 = vmatpush.bf16.msra.mxu0 %v227
    %279 = vmatmul.bf16.gmra.mxu0 %v155
    %v280 = vpop.f32.mrf.mxu0
    %v281 = vadd.f32 %v175, %v280
    %v282 = vpop.f32.mrf.mxu0
    %283 = vdwg.mxu0
    %v284 = vmax.f32 %v268, 0.0
    %v285 = vmax.f32 %v281, 0.0
    %v286 = vpack.c.bf16 %v284, %v284
    %v287 = vpack.c.bf16 %v285, %v285
    %v288 = vld [vmem:[#allocation10] sm:$0xff]
    %v289 = vld [vmem:[#allocation10 + $0x8] sm:$0xff]
    %v290 = vld [vmem:[#allocation10 + $0x10] sm:$0xff]
    %v291 = vld [vmem:[#allocation10 + $0x18] sm:$0xff]
    %v292 = vld [vmem:[#allocation10 + $0x20] sm:$0xff]
    %v293 = vld [vmem:[#allocation10 + $0x28] sm:$0xff]
    %v294 = vld [vmem:[#allocation10 + $0x30] sm:$0xff]
    %v295 = vld [vmem:[#allocation10 + $0x38] sm:$0xff]
    %v296 = vld [vmem:[#allocation10 + $0x40] sm:$0xff]
    %v297 = vld [vmem:[#allocation10 + $0x48] sm:$0xff]
    %v298 = vld [vmem:[#allocation10 + $0x50] sm:$0xff]
    %v299 = vld [vmem:[#allocation10 + $0x58] sm:$0xff]
    %v300 = vld [vmem:[#allocation10 + $0x60] sm:$0xff]
    %v301 = vld [vmem:[#allocation10 + $0x68] sm:$0xff]
    %v302 = vld [vmem:[#allocation10 + $0x70] sm:$0xff]
    %v303 = vld [vmem:[#allocation10 + $0x78] sm:$0xff]
    %v304 = vld [vmem:[#allocation10 + $0x80] sm:$0xff]
    %v305 = vld [vmem:[#allocation10 + $0x88] sm:$0xff]
    %v306 = vld [vmem:[#allocation10 + $0x90] sm:$0xff]
    %v307 = vld [vmem:[#allocation10 + $0x98] sm:$0xff]
    %v308 = vld [vmem:[#allocation10 + $0xa0] sm:$0xff]
    %v309 = vld [vmem:[#allocation10 + $0xa8] sm:$0xff]
    %v310 = vld [vmem:[#allocation10 + $0xb0] sm:$0xff]
    %v311 = vld [vmem:[#allocation10 + $0xb8] sm:$0xff]
    %v312 = vld [vmem:[#allocation10 + $0xc0] sm:$0xff]
    %v313 = vld [vmem:[#allocation10 + $0xc8] sm:$0xff]
    %v314 = vld [vmem:[#allocation10 + $0xd0] sm:$0xff]
    %v315 = vld [vmem:[#allocation10 + $0xd8] sm:$0xff]
    %v316 = vld [vmem:[#allocation10 + $0xe0] sm:$0xff]
    %v317 = vld [vmem:[#allocation10 + $0xe8] sm:$0xff]
    %v318 = vld [vmem:[#allocation10 + $0xf0] sm:$0xff]
    %v319 = vld [vmem:[#allocation10 + $0xf8] sm:$0xff]
    %v320 = vld [vmem:[#allocation10 + $0x100] sm:$0xff]
    %v321 = vld [vmem:[#allocation10 + $0x108] sm:$0xff]
    %v322 = vld [vmem:[#allocation10 + $0x110] sm:$0xff]
    %v323 = vld [vmem:[#allocation10 + $0x118] sm:$0xff]
    %v324 = vld [vmem:[#allocation10 + $0x120] sm:$0xff]
    %v325 = vld [vmem:[#allocation10 + $0x128] sm:$0xff]
    %v326 = vld [vmem:[#allocation10 + $0x130] sm:$0xff]
    %v327 = vld [vmem:[#allocation10 + $0x138] sm:$0xff]
    %v328 = vld [vmem:[#allocation10 + $0x140] sm:$0xff]
    %v329 = vld [vmem:[#allocation10 + $0x148] sm:$0xff]
    %v330 = vld [vmem:[#allocation10 + $0x150] sm:$0xff]
    %v331 = vld [vmem:[#allocation10 + $0x158] sm:$0xff]
    %v332 = vld [vmem:[#allocation10 + $0x160] sm:$0xff]
    %v333 = vld [vmem:[#allocation10 + $0x168] sm:$0xff]
    %v334 = vld [vmem:[#allocation10 + $0x170] sm:$0xff]
    %v335 = vld [vmem:[#allocation10 + $0x178] sm:$0xff]
    %v336 = vld [vmem:[#allocation10 + $0x180] sm:$0xff]
    %v337 = vld [vmem:[#allocation10 + $0x188] sm:$0xff]
    %v338 = vld [vmem:[#allocation10 + $0x190] sm:$0xff]
    %v339 = vld [vmem:[#allocation10 + $0x198] sm:$0xff]
    %v340 = vld [vmem:[#allocation10 + $0x1a0] sm:$0xff]
    %v341 = vld [vmem:[#allocation10 + $0x1a8] sm:$0xff]
    %v342 = vld [vmem:[#allocation10 + $0x1b0] sm:$0xff]
    %v343 = vld [vmem:[#allocation10 + $0x1b8] sm:$0xff]
    %v344 = vld [vmem:[#allocation10 + $0x1c0] sm:$0xff]
    %v345 = vld [vmem:[#allocation10 + $0x1c8] sm:$0xff]
    %v346 = vld [vmem:[#allocation10 + $0x1d0] sm:$0xff]
    %v347 = vld [vmem:[#allocation10 + $0x1d8] sm:$0xff]
    %v348 = vld [vmem:[#allocation10 + $0x1e0] sm:$0xff]
    %v349 = vld [vmem:[#allocation10 + $0x1e8] sm:$0xff]
    %v350 = vld [vmem:[#allocation10 + $0x1f0] sm:$0xff]
    %v351 = vld [vmem:[#allocation10 + $0x1f8] sm:$0xff]
    %v352 = vld [vmem:[%s6] sm:$0xf]
    %v354 = vperm.slane %v352, 0
    %v355 = vperm.slane %v352, 1
    %v356 = vperm.slane %v352, 2
    %v357 = vperm.slane %v352, 3
    %v426 = vunpack.c.l.b16 %v288
    %v427 = vunpack.c.h.b16 %v288
    %v428 = vunpack.c.l.b16 %v289
    %v429 = vunpack.c.h.b16 %v289
    %v430 = vunpack.c.l.b16 %v290
    %v431 = vunpack.c.h.b16 %v290
    %v432 = vunpack.c.l.b16 %v291
    %v433 = vunpack.c.h.b16 %v291
    %v434 = vunpack.c.l.b16 %v292
    %v435 = vunpack.c.h.b16 %v292
    %v436 = vunpack.c.l.b16 %v293
    %v437 = vunpack.c.h.b16 %v293
    %v438 = vunpack.c.l.b16 %v294
    %v439 = vunpack.c.h.b16 %v294
    %v440 = vunpack.c.l.b16 %v295
    %v441 = vunpack.c.h.b16 %v295
    %v442 = vunpack.c.l.b16 %v296
    %v443 = vunpack.c.h.b16 %v296
    %v444 = vunpack.c.l.b16 %v297
    %v445 = vunpack.c.h.b16 %v297
    %v446 = vunpack.c.l.b16 %v298
    %v447 = vunpack.c.h.b16 %v298
    %v448 = vunpack.c.l.b16 %v299
    %v449 = vunpack.c.h.b16 %v299
    %v450 = vunpack.c.l.b16 %v300
    %v451 = vunpack.c.h.b16 %v300
    %v452 = vunpack.c.l.b16 %v301
    %v453 = vunpack.c.h.b16 %v301
    %v454 = vunpack.c.l.b16 %v302
    %v455 = vunpack.c.h.b16 %v302
    %v456 = vunpack.c.l.b16 %v303
    %v457 = vunpack.c.h.b16 %v303
    %v458 = vunpack.c.l.b16 %v304
    %v459 = vunpack.c.h.b16 %v304
    %v460 = vunpack.c.l.b16 %v305
    %v461 = vunpack.c.h.b16 %v305
    %v462 = vunpack.c.l.b16 %v306
    %v463 = vunpack.c.h.b16 %v306
    %v464 = vunpack.c.l.b16 %v307
    %v465 = vunpack.c.h.b16 %v307
    %v466 = vunpack.c.l.b16 %v308
    %v467 = vunpack.c.h.b16 %v308
    %v468 = vunpack.c.l.b16 %v309
    %v469 = vunpack.c.h.b16 %v309
    %v470 = vunpack.c.l.b16 %v310
    %v471 = vunpack.c.h.b16 %v310
    %v472 = vunpack.c.l.b16 %v311
    %v473 = vunpack.c.h.b16 %v311
    %v474 = vunpack.c.l.b16 %v312
    %v475 = vunpack.c.h.b16 %v312
    %v476 = vunpack.c.l.b16 %v313
    %v477 = vunpack.c.h.b16 %v313
    %v478 = vunpack.c.l.b16 %v314
    %v479 = vunpack.c.h.b16 %v314
    %v480 = vunpack.c.l.b16 %v315
    %v481 = vunpack.c.h.b16 %v315
    %v482 = vunpack.c.l.b16 %v316
    %v483 = vunpack.c.h.b16 %v316
    %v484 = vunpack.c.l.b16 %v317
    %v485 = vunpack.c.h.b16 %v317
    %v486 = vunpack.c.l.b16 %v318
    %v487 = vunpack.c.h.b16 %v318
    %v488 = vunpack.c.l.b16 %v319
    %v489 = vunpack.c.h.b16 %v319
    %v490 = vunpack.c.l.b16 %v320
    %v491 = vunpack.c.h.b16 %v320
    %v492 = vunpack.c.l.b16 %v321
    %v493 = vunpack.c.h.b16 %v321
    %v494 = vunpack.c.l.b16 %v322
    %v495 = vunpack.c.h.b16 %v322
    %v496 = vunpack.c.l.b16 %v323
    %v497 = vunpack.c.h.b16 %v323
    %v498 = vunpack.c.l.b16 %v324
    %v499 = vunpack.c.h.b16 %v324
    %v500 = vunpack.c.l.b16 %v325
    %v501 = vunpack.c.h.b16 %v325
    %v502 = vunpack.c.l.b16 %v326
    %v503 = vunpack.c.h.b16 %v326
    %v504 = vunpack.c.l.b16 %v327
    %v505 = vunpack.c.h.b16 %v327
    %v506 = vunpack.c.l.b16 %v328
    %v507 = vunpack.c.h.b16 %v328
    %v508 = vunpack.c.l.b16 %v329
    %v509 = vunpack.c.h.b16 %v329
    %v510 = vunpack.c.l.b16 %v330
    %v511 = vunpack.c.h.b16 %v330
    %v512 = vunpack.c.l.b16 %v331
    %v513 = vunpack.c.h.b16 %v331
    %v514 = vunpack.c.l.b16 %v332
    %v515 = vunpack.c.h.b16 %v332
    %v516 = vunpack.c.l.b16 %v333
    %v517 = vunpack.c.h.b16 %v333
    %v518 = vunpack.c.l.b16 %v334
    %v519 = vunpack.c.h.b16 %v334
    %v520 = vunpack.c.l.b16 %v335
    %v521 = vunpack.c.h.b16 %v335
    %v522 = vunpack.c.l.b16 %v336
    %v523 = vunpack.c.h.b16 %v336
    %v524 = vunpack.c.l.b16 %v337
    %v525 = vunpack.c.h.b16 %v337
    %v526 = vunpack.c.l.b16 %v338
    %v527 = vunpack.c.h.b16 %v338
    %v528 = vunpack.c.l.b16 %v339
    %v529 = vunpack.c.h.b16 %v339
    %v530 = vunpack.c.l.b16 %v340
    %v531 = vunpack.c.h.b16 %v340
    %v532 = vunpack.c.l.b16 %v341
    %v533 = vunpack.c.h.b16 %v341
    %v534 = vunpack.c.l.b16 %v342
    %v535 = vunpack.c.h.b16 %v342
    %v536 = vunpack.c.l.b16 %v343
    %v537 = vunpack.c.h.b16 %v343
    %v538 = vunpack.c.l.b16 %v344
    %v539 = vunpack.c.h.b16 %v344
    %v540 = vunpack.c.l.b16 %v345
    %v541 = vunpack.c.h.b16 %v345
    %v542 = vunpack.c.l.b16 %v346
    %v543 = vunpack.c.h.b16 %v346
    %v544 = vunpack.c.l.b16 %v347
    %v545 = vunpack.c.h.b16 %v347
    %v546 = vunpack.c.l.b16 %v348
    %v547 = vunpack.c.h.b16 %v348
    %v548 = vunpack.c.l.b16 %v349
    %v549 = vunpack.c.h.b16 %v349
    %v550 = vunpack.c.l.b16 %v350
    %v551 = vunpack.c.h.b16 %v350
    %v552 = vunpack.c.l.b16 %v351
    %v553 = vunpack.c.h.b16 %v351
    %v554 = vpack.c.b16 %v430, %v426
    %v555 = vpack.c.b16 %v431, %v427
    %v556 = vpack.c.b16 %v432, %v428
    %v557 = vpack.c.b16 %v433, %v429
    %v558 = vpack.c.b16 %v438, %v434
    %v559 = vpack.c.b16 %v439, %v435
    %v560 = vpack.c.b16 %v440, %v436
    %v561 = vpack.c.b16 %v441, %v437
    %v562 = vpack.c.b16 %v446, %v442
    %v563 = vpack.c.b16 %v447, %v443
    %v564 = vpack.c.b16 %v448, %v444
    %v565 = vpack.c.b16 %v449, %v445
    %v566 = vpack.c.b16 %v454, %v450
    %v567 = vpack.c.b16 %v455, %v451
    %v568 = vpack.c.b16 %v456, %v452
    %v569 = vpack.c.b16 %v457, %v453
    %v570 = vpack.c.b16 %v462, %v458
    %v571 = vpack.c.b16 %v463, %v459
    %v572 = vpack.c.b16 %v464, %v460
    %v573 = vpack.c.b16 %v465, %v461
    %v574 = vpack.c.b16 %v470, %v466
    %v575 = vpack.c.b16 %v471, %v467
    %v576 = vpack.c.b16 %v472, %v468
    %v577 = vpack.c.b16 %v473, %v469
    %v578 = vpack.c.b16 %v478, %v474
    %v579 = vpack.c.b16 %v479, %v475
    %v580 = vpack.c.b16 %v480, %v476
    %v581 = vpack.c.b16 %v481, %v477
    %v582 = vpack.c.b16 %v486, %v482
    %v583 = vpack.c.b16 %v487, %v483
    %v584 = vpack.c.b16 %v488, %v484
    %v585 = vpack.c.b16 %v489, %v485
    %v586 = vpack.c.b16 %v494, %v490
    %v587 = vpack.c.b16 %v495, %v491
    %v588 = vpack.c.b16 %v496, %v492
    %v589 = vpack.c.b16 %v497, %v493
    %v590 = vpack.c.b16 %v502, %v498
    %v591 = vpack.c.b16 %v503, %v499
    %v592 = vpack.c.b16 %v504, %v500
    %v593 = vpack.c.b16 %v505, %v501
    %v594 = vpack.c.b16 %v510, %v506
    %v595 = vpack.c.b16 %v511, %v507
    %v596 = vpack.c.b16 %v512, %v508
    %v597 = vpack.c.b16 %v513, %v509
    %v598 = vpack.c.b16 %v518, %v514
    %v599 = vpack.c.b16 %v519, %v515
    %v600 = vpack.c.b16 %v520, %v516
    %v601 = vpack.c.b16 %v521, %v517
    %v602 = vpack.c.b16 %v526, %v522
    %v603 = vpack.c.b16 %v527, %v523
    %v604 = vpack.c.b16 %v528, %v524
    %v605 = vpack.c.b16 %v529, %v525
    %v606 = vpack.c.b16 %v534, %v530
    %v607 = vpack.c.b16 %v535, %v531
    %v608 = vpack.c.b16 %v536, %v532
    %v609 = vpack.c.b16 %v537, %v533
    %v610 = vpack.c.b16 %v542, %v538
    %v611 = vpack.c.b16 %v543, %v539
    %v612 = vpack.c.b16 %v544, %v540
    %v613 = vpack.c.b16 %v545, %v541
    %v614 = vpack.c.b16 %v550, %v546
    %v615 = vpack.c.b16 %v551, %v547
    %v616 = vpack.c.b16 %v552, %v548
    %v617 = vpack.c.b16 %v553, %v549
    %682 = vmatpush.bf16.msra.mxu0 %v582
    %683 = vmatpush.bf16.msra.mxu0 %v578
    %684 = vmatpush.bf16.msra.mxu0 %v574
    %685 = vmatpush.bf16.msra.mxu0 %v570
    %686 = vmatpush.bf16.msra.mxu0 %v566
    %687 = vmatpush.bf16.msra.mxu0 %v562
    %688 = vmatpush.bf16.msra.mxu0 %v558
    %689 = vmatpush.bf16.msra.mxu0 %v554
    %690 = vmatmul.bf16.gmra.mxu0 %v286
    %v691 = vpop.f32.mrf.mxu0
    %v692 = vadd.f32 %v354, %v691
    %v693 = vpop.f32.mrf.mxu0
    %694 = vdwg.mxu0
    %695 = vmatpush.bf16.msra.mxu0 %v614
    %696 = vmatpush.bf16.msra.mxu0 %v610
    %697 = vmatpush.bf16.msra.mxu0 %v606
    %698 = vmatpush.bf16.msra.mxu0 %v602
    %699 = vmatpush.bf16.msra.mxu0 %v598
    %700 = vmatpush.bf16.msra.mxu0 %v594
    %701 = vmatpush.bf16.msra.mxu0 %v590
    %702 = vmatpush.bf16.msra.mxu0 %v586
    %703 = vmatmul.bf16.gmra.mxu0 %v287
    %v704 = vpop.f32.mrf.mxu0
    %v705 = vadd.f32 %v692, %v704
    %v706 = vpop.f32.mrf.mxu0
    %707 = vdwg.mxu0
    %708 = vmatpush.bf16.msra.mxu0 %v583
    %709 = vmatpush.bf16.msra.mxu0 %v579
    %710 = vmatpush.bf16.msra.mxu0 %v575
    %711 = vmatpush.bf16.msra.mxu0 %v571
    %712 = vmatpush.bf16.msra.mxu0 %v567
    %713 = vmatpush.bf16.msra.mxu0 %v563
    %714 = vmatpush.bf16.msra.mxu0 %v559
    %715 = vmatpush.bf16.msra.mxu0 %v555
    %716 = vmatmul.bf16.gmra.mxu0 %v286
    %v717 = vpop.f32.mrf.mxu0
    %v718 = vadd.f32 %v355, %v717
    %v719 = vpop.f32.mrf.mxu0
    %720 = vdwg.mxu0
    %721 = vmatpush.bf16.msra.mxu0 %v615
    %722 = vmatpush.bf16.msra.mxu0 %v611
    %723 = vmatpush.bf16.msra.mxu0 %v607
    %724 = vmatpush.bf16.msra.mxu0 %v603
    %725 = vmatpush.bf16.msra.mxu0 %v599
    %726 = vmatpush.bf16.msra.mxu0 %v595
    %727 = vmatpush.bf16.msra.mxu0 %v591
    %728 = vmatpush.bf16.msra.mxu0 %v587
    %729 = vmatmul.bf16.gmra.mxu0 %v287
    %v730 = vpop.f32.mrf.mxu0
    %v731 = vadd.f32 %v718, %v730
    %v732 = vpop.f32.mrf.mxu0
    %733 = vdwg.mxu0
    %734 = vmatpush.bf16.msra.mxu0 %v584
    %735 = vmatpush.bf16.msra.mxu0 %v580
    %736 = vmatpush.bf16.msra.mxu0 %v576
    %737 = vmatpush.bf16.msra.mxu0 %v572
    %738 = vmatpush.bf16.msra.mxu0 %v568
    %739 = vmatpush.bf16.msra.mxu0 %v564
    %740 = vmatpush.bf16.msra.mxu0 %v560
    %741 = vmatpush.bf16.msra.mxu0 %v556
    %742 = vmatmul.bf16.gmra.mxu0 %v286
    %v743 = vpop.f32.mrf.mxu0
    %v744 = vadd.f32 %v356, %v743
    %v745 = vpop.f32.mrf.mxu0
    %746 = vdwg.mxu0
    %747 = vmatpush.bf16.msra.mxu0 %v616
    %748 = vmatpush.bf16.msra.mxu0 %v612
    %749 = vmatpush.bf16.msra.mxu0 %v608
    %750 = vmatpush.bf16.msra.mxu0 %v604
    %751 = vmatpush.bf16.msra.mxu0 %v600
    %752 = vmatpush.bf16.msra.mxu0 %v596
    %753 = vmatpush.bf16.msra.mxu0 %v592
    %754 = vmatpush.bf16.msra.mxu0 %v588
    %755 = vmatmul.bf16.gmra.mxu0 %v287
    %v756 = vpop.f32.mrf.mxu0
    %v757 = vadd.f32 %v744, %v756
    %v758 = vpop.f32.mrf.mxu0
    %759 = vdwg.mxu0
    %760 = vmatpush.bf16.msra.mxu0 %v585
    %761 = vmatpush.bf16.msra.mxu0 %v581
    %762 = vmatpush.bf16.msra.mxu0 %v577
    %763 = vmatpush.bf16.msra.mxu0 %v573
    %764 = vmatpush.bf16.msra.mxu0 %v569
    %765 = vmatpush.bf16.msra.mxu0 %v565
    %766 = vmatpush.bf16.msra.mxu0 %v561
    %767 = vmatpush.bf16.msra.mxu0 %v557
    %768 = vmatmul.bf16.gmra.mxu0 %v286
    %v769 = vpop.f32.mrf.mxu0
    %v770 = vadd.f32 %v357, %v769
    %v771 = vpop.f32.mrf.mxu0
    %772 = vdwg.mxu0
    %773 = vmatpush.bf16.msra.mxu0 %v617
    %774 = vmatpush.bf16.msra.mxu0 %v613
    %775 = vmatpush.bf16.msra.mxu0 %v609
    %776 = vmatpush.bf16.msra.mxu0 %v605
    %777 = vmatpush.bf16.msra.mxu0 %v601
    %778 = vmatpush.bf16.msra.mxu0 %v597
    %779 = vmatpush.bf16.msra.mxu0 %v593
    %780 = vmatpush.bf16.msra.mxu0 %v589
    %781 = vmatmul.bf16.gmra.mxu0 %v287
    %v782 = vpop.f32.mrf.mxu0
    %v783 = vadd.f32 %v770, %v782
    %v784 = vpop.f32.mrf.mxu0
    %785 = vdwg.mxu0
    %v786 = vmax.f32 %v705, 0.0
    %v787 = vmax.f32 %v731, 0.0
    %v788 = vmax.f32 %v757, 0.0
    %v789 = vmax.f32 %v783, 0.0
    %v790 = vpack.c.bf16 %v786, %v786
    %v791 = vpack.c.bf16 %v787, %v787
    %v792 = vpack.c.bf16 %v788, %v788
    %v793 = vpack.c.bf16 %v789, %v789
    %v794 = vld [vmem:[#allocation11] sm:$0xf]
    %v795 = vld [vmem:[#allocation11 + $0x4] sm:$0xf]
    %v796 = vld [vmem:[#allocation11 + $0x8] sm:$0xf]
    %v797 = vld [vmem:[#allocation11 + $0xc] sm:$0xf]
    %v798 = vld [vmem:[#allocation11 + $0x10] sm:$0xf]
    %v799 = vld [vmem:[#allocation11 + $0x14] sm:$0xf]
    %v800 = vld [vmem:[#allocation11 + $0x18] sm:$0xf]
    %v801 = vld [vmem:[#allocation11 + $0x1c] sm:$0xf]
    %v802 = vld [vmem:[#allocation11 + $0x20] sm:$0xf]
    %v803 = vld [vmem:[#allocation11 + $0x24] sm:$0xf]
    %v804 = vld [vmem:[#allocation11 + $0x28] sm:$0xf]
    %v805 = vld [vmem:[#allocation11 + $0x2c] sm:$0xf]
    %v806 = vld [vmem:[#allocation11 + $0x30] sm:$0xf]
    %v807 = vld [vmem:[#allocation11 + $0x34] sm:$0xf]
    %v808 = vld [vmem:[#allocation11 + $0x38] sm:$0xf]
    %v809 = vld [vmem:[#allocation11 + $0x3c] sm:$0xf]
    %v810 = vld [vmem:[#allocation11 + $0x40] sm:$0xf]
    %v811 = vld [vmem:[#allocation11 + $0x44] sm:$0xf]
    %v812 = vld [vmem:[#allocation11 + $0x48] sm:$0xf]
    %v813 = vld [vmem:[#allocation11 + $0x4c] sm:$0xf]
    %v814 = vld [vmem:[#allocation11 + $0x50] sm:$0xf]
    %v815 = vld [vmem:[#allocation11 + $0x54] sm:$0xf]
    %v816 = vld [vmem:[#allocation11 + $0x58] sm:$0xf]
    %v817 = vld [vmem:[#allocation11 + $0x5c] sm:$0xf]
    %v818 = vld [vmem:[#allocation11 + $0x60] sm:$0xf]
    %v819 = vld [vmem:[#allocation11 + $0x64] sm:$0xf]
    %v820 = vld [vmem:[#allocation11 + $0x68] sm:$0xf]
    %v821 = vld [vmem:[#allocation11 + $0x6c] sm:$0xf]
    %v822 = vld [vmem:[#allocation11 + $0x70] sm:$0xf]
    %v823 = vld [vmem:[#allocation11 + $0x74] sm:$0xf]
    %v824 = vld [vmem:[#allocation11 + $0x78] sm:$0xf]
    %v825 = vld [vmem:[#allocation11 + $0x7c] sm:$0xf]
    %v826 = vld [vmem:[#allocation11 + $0x80] sm:$0xf]
    %v827 = vld [vmem:[#allocation11 + $0x84] sm:$0xf]
    %v828 = vld [vmem:[#allocation11 + $0x88] sm:$0xf]
    %v829 = vld [vmem:[#allocation11 + $0x8c] sm:$0xf]
    %v830 = vld [vmem:[#allocation11 + $0x90] sm:$0xf]
    %v831 = vld [vmem:[#allocation11 + $0x94] sm:$0xf]
    %v832 = vld [vmem:[#allocation11 + $0x98] sm:$0xf]
    %v833 = vld [vmem:[#allocation11 + $0x9c] sm:$0xf]
    %v834 = vld [vmem:[#allocation11 + $0xa0] sm:$0xf]
    %v835 = vld [vmem:[#allocation11 + $0xa4] sm:$0xf]
    %v836 = vld [vmem:[#allocation11 + $0xa8] sm:$0xf]
    %v837 = vld [vmem:[#allocation11 + $0xac] sm:$0xf]
    %v838 = vld [vmem:[#allocation11 + $0xb0] sm:$0xf]
    %v839 = vld [vmem:[#allocation11 + $0xb4] sm:$0xf]
    %v840 = vld [vmem:[#allocation11 + $0xb8] sm:$0xf]
    %v841 = vld [vmem:[#allocation11 + $0xbc] sm:$0xf]
    %v842 = vld [vmem:[#allocation11 + $0xc0] sm:$0xf]
    %v843 = vld [vmem:[#allocation11 + $0xc4] sm:$0xf]
    %v844 = vld [vmem:[#allocation11 + $0xc8] sm:$0xf]
    %v845 = vld [vmem:[#allocation11 + $0xcc] sm:$0xf]
    %v846 = vld [vmem:[#allocation11 + $0xd0] sm:$0xf]
    %v847 = vld [vmem:[#allocation11 + $0xd4] sm:$0xf]
    %v848 = vld [vmem:[#allocation11 + $0xd8] sm:$0xf]
    %v849 = vld [vmem:[#allocation11 + $0xdc] sm:$0xf]
    %v850 = vld [vmem:[#allocation11 + $0xe0] sm:$0xf]
    %v851 = vld [vmem:[#allocation11 + $0xe4] sm:$0xf]
    %v852 = vld [vmem:[#allocation11 + $0xe8] sm:$0xf]
    %v853 = vld [vmem:[#allocation11 + $0xec] sm:$0xf]
    %v854 = vld [vmem:[#allocation11 + $0xf0] sm:$0xf]
    %v855 = vld [vmem:[#allocation11 + $0xf4] sm:$0xf]
    %v856 = vld [vmem:[#allocation11 + $0xf8] sm:$0xf]
    %v857 = vld [vmem:[#allocation11 + $0xfc] sm:$0xf]
    %v858 = vld [vmem:[%s8] sm:$0x1]
    %v860 = vperm.slane %v858, 0
    %v926 = vunpack.c.l.b16 %v794
    %v927 = vunpack.c.l.b16 %v795
    %v928 = vunpack.c.l.b16 %v796
    %v929 = vunpack.c.l.b16 %v797
    %v930 = vunpack.c.l.b16 %v798
    %v931 = vunpack.c.l.b16 %v799
    %v932 = vunpack.c.l.b16 %v800
    %v933 = vunpack.c.l.b16 %v801
    %v934 = vunpack.c.l.b16 %v802
    %v935 = vunpack.c.l.b16 %v803
    %v936 = vunpack.c.l.b16 %v804
    %v937 = vunpack.c.l.b16 %v805
    %v938 = vunpack.c.l.b16 %v806
    %v939 = vunpack.c.l.b16 %v807
    %v940 = vunpack.c.l.b16 %v808
    %v941 = vunpack.c.l.b16 %v809
    %v942 = vunpack.c.l.b16 %v810
    %v943 = vunpack.c.l.b16 %v811
    %v944 = vunpack.c.l.b16 %v812
    %v945 = vunpack.c.l.b16 %v813
    %v946 = vunpack.c.l.b16 %v814
    %v947 = vunpack.c.l.b16 %v815
    %v948 = vunpack.c.l.b16 %v816
    %v949 = vunpack.c.l.b16 %v817
    %v950 = vunpack.c.l.b16 %v818
    %v951 = vunpack.c.l.b16 %v819
    %v952 = vunpack.c.l.b16 %v820
    %v953 = vunpack.c.l.b16 %v821
    %v954 = vunpack.c.l.b16 %v822
    %v955 = vunpack.c.l.b16 %v823
    %v956 = vunpack.c.l.b16 %v824
    %v957 = vunpack.c.l.b16 %v825
    %v958 = vunpack.c.l.b16 %v826
    %v959 = vunpack.c.l.b16 %v827
    %v960 = vunpack.c.l.b16 %v828
    %v961 = vunpack.c.l.b16 %v829
    %v962 = vunpack.c.l.b16 %v830
    %v963 = vunpack.c.l.b16 %v831
    %v964 = vunpack.c.l.b16 %v832
    %v965 = vunpack.c.l.b16 %v833
    %v966 = vunpack.c.l.b16 %v834
    %v967 = vunpack.c.l.b16 %v835
    %v968 = vunpack.c.l.b16 %v836
    %v969 = vunpack.c.l.b16 %v837
    %v970 = vunpack.c.l.b16 %v838
    %v971 = vunpack.c.l.b16 %v839
    %v972 = vunpack.c.l.b16 %v840
    %v973 = vunpack.c.l.b16 %v841
    %v974 = vunpack.c.l.b16 %v842
    %v975 = vunpack.c.l.b16 %v843
    %v976 = vunpack.c.l.b16 %v844
    %v977 = vunpack.c.l.b16 %v845
    %v978 = vunpack.c.l.b16 %v846
    %v979 = vunpack.c.l.b16 %v847
    %v980 = vunpack.c.l.b16 %v848
    %v981 = vunpack.c.l.b16 %v849
    %v982 = vunpack.c.l.b16 %v850
    %v983 = vunpack.c.l.b16 %v851
    %v984 = vunpack.c.l.b16 %v852
    %v985 = vunpack.c.l.b16 %v853
    %v986 = vunpack.c.l.b16 %v854
    %v987 = vunpack.c.l.b16 %v855
    %v988 = vunpack.c.l.b16 %v856
    %v989 = vunpack.c.l.b16 %v857
    %v990 = vpack.c.b16 %v927, %v926
    %v991 = vpack.c.b16 %v929, %v928
    %v992 = vpack.c.b16 %v931, %v930
    %v993 = vpack.c.b16 %v933, %v932
    %v994 = vpack.c.b16 %v935, %v934
    %v995 = vpack.c.b16 %v937, %v936
    %v996 = vpack.c.b16 %v939, %v938
    %v997 = vpack.c.b16 %v941, %v940
    %v998 = vpack.c.b16 %v943, %v942
    %v999 = vpack.c.b16 %v945, %v944
    %v1000 = vpack.c.b16 %v947, %v946
    %v1001 = vpack.c.b16 %v949, %v948
    %v1002 = vpack.c.b16 %v951, %v950
    %v1003 = vpack.c.b16 %v953, %v952
    %v1004 = vpack.c.b16 %v955, %v954
    %v1005 = vpack.c.b16 %v957, %v956
    %v1006 = vpack.c.b16 %v959, %v958
    %v1007 = vpack.c.b16 %v961, %v960
    %v1008 = vpack.c.b16 %v963, %v962
    %v1009 = vpack.c.b16 %v965, %v964
    %v1010 = vpack.c.b16 %v967, %v966
    %v1011 = vpack.c.b16 %v969, %v968
    %v1012 = vpack.c.b16 %v971, %v970
    %v1013 = vpack.c.b16 %v973, %v972
    %v1014 = vpack.c.b16 %v975, %v974
    %v1015 = vpack.c.b16 %v977, %v976
    %v1016 = vpack.c.b16 %v979, %v978
    %v1017 = vpack.c.b16 %v981, %v980
    %v1018 = vpack.c.b16 %v983, %v982
    %v1019 = vpack.c.b16 %v985, %v984
    %v1020 = vpack.c.b16 %v987, %v986
    %v1021 = vpack.c.b16 %v989, %v988
    %1054 = vmatpush.bf16.msra.mxu0 %v997
    %1055 = vmatpush.bf16.msra.mxu0 %v996
    %1056 = vmatpush.bf16.msra.mxu0 %v995
    %1057 = vmatpush.bf16.msra.mxu0 %v994
    %1058 = vmatpush.bf16.msra.mxu0 %v993
    %1059 = vmatpush.bf16.msra.mxu0 %v992
    %1060 = vmatpush.bf16.msra.mxu0 %v991
    %1061 = vmatpush.bf16.msra.mxu0 %v990
    %1062 = vmatmul.bf16.gmra.mxu0 %v790
    %v1063 = vpop.f32.mrf.mxu0
    %v1064 = vadd.f32 %v860, %v1063
    %v1065 = vpop.f32.mrf.mxu0
    %1066 = vdwg.mxu0
    %1067 = vmatpush.bf16.msra.mxu0 %v1005
    %1068 = vmatpush.bf16.msra.mxu0 %v1004
    %1069 = vmatpush.bf16.msra.mxu0 %v1003
    %1070 = vmatpush.bf16.msra.mxu0 %v1002
    %1071 = vmatpush.bf16.msra.mxu0 %v1001
    %1072 = vmatpush.bf16.msra.mxu0 %v1000
    %1073 = vmatpush.bf16.msra.mxu0 %v999
    %1074 = vmatpush.bf16.msra.mxu0 %v998
    %1075 = vmatmul.bf16.gmra.mxu0 %v791
    %v1076 = vpop.f32.mrf.mxu0
    %v1077 = vadd.f32 %v1064, %v1076
    %v1078 = vpop.f32.mrf.mxu0
    %1079 = vdwg.mxu0
    %1080 = vmatpush.bf16.msra.mxu0 %v1013
    %1081 = vmatpush.bf16.msra.mxu0 %v1012
    %1082 = vmatpush.bf16.msra.mxu0 %v1011
    %1083 = vmatpush.bf16.msra.mxu0 %v1010
    %1084 = vmatpush.bf16.msra.mxu0 %v1009
    %1085 = vmatpush.bf16.msra.mxu0 %v1008
    %1086 = vmatpush.bf16.msra.mxu0 %v1007
    %1087 = vmatpush.bf16.msra.mxu0 %v1006
    %1088 = vmatmul.bf16.gmra.mxu0 %v792
    %v1089 = vpop.f32.mrf.mxu0
    %v1090 = vadd.f32 %v1077, %v1089
    %v1091 = vpop.f32.mrf.mxu0
    %1092 = vdwg.mxu0
    %1093 = vmatpush.bf16.msra.mxu0 %v1021
    %1094 = vmatpush.bf16.msra.mxu0 %v1020
    %1095 = vmatpush.bf16.msra.mxu0 %v1019
    %1096 = vmatpush.bf16.msra.mxu0 %v1018
    %1097 = vmatpush.bf16.msra.mxu0 %v1017
    %1098 = vmatpush.bf16.msra.mxu0 %v1016
    %1099 = vmatpush.bf16.msra.mxu0 %v1015
    %1100 = vmatpush.bf16.msra.mxu0 %v1014
    %1101 = vmatmul.bf16.gmra.mxu0 %v793
    %v1102 = vpop.f32.mrf.mxu0
    %v1103 = vadd.f32 %v1090, %v1102
    %v1104 = vpop.f32.mrf.mxu0
    %1105 = vdwg.mxu0
    %v1106 = vpack.c.bf16 %v1103, %v1103
    %1107 = vst [vmem:[#allocation13] sm:$0xf] %v1106
    // Predicated region
    $region62: #{tpu_custom_call.1} parent=1 // pred_check
      _
    $region63: #{tpu_custom_call.1} parent=1 // pred_check_branch
      %1109 = sbr.rel (0) target = $region65
    $region64: #{tpu_custom_call.1} parent=1 // pred_region
      %1111 = vsyncadd [#allocation4], 0
      %s1113 = sshll.u32 [#allocation13], 4
      %s1114 = int_to_ptr.vmem [resolvable:$true] %s1113
      %s1115 = sshll.u32 %s9, 4
      %s1116 = int_to_ptr.hbm [resolvable:$true] %s1115
      %1118 = dma.vmem_to_hbm [thread:$0]  %s1114, 64, %s1116, [#allocation4]
    $region65: #{tpu_custom_call.1} parent=1 // pred_fallthru
      _
    // Predicated region
    $region66: #{tpu_custom_call.1} parent=1 // pred_check
      _
    $region67: #{tpu_custom_call.1} parent=1 // pred_check_branch
      %1120 = sbr.rel (0) target = $region69
    $region68: #{tpu_custom_call.1} parent=1 // pred_region
      %1122 = dma.done [#allocation4], 64
    $region69: #{tpu_custom_call.1} parent=1 // pred_fallthru
      _
    %1123 = vsyncpa [#allocation3], 1
    %1124 = vsyncpa [#allocation6], 1
    %1125 = vsyncpa [#allocation9], 1
    %1126 = vsyncpa [#allocation12], 1
    %1127 = vsyncpa [#allocation4], 1

</llo_original>
